<compile_context>
chip_gen: v7x
topology: tpu7x:2x2x1
jax: 0.10.0
libtpu: 0.0.40
codegen_flags: <defaults>
</compile_context>

<pallas_src>
import functools

import jax
import jax.numpy as jnp
from jax.experimental import pallas as pl
from jax.experimental.pallas import tpu as pltpu

LN_EPS = 1e-5                  # torch.nn.LayerNorm default
_INV_SQRT2 = 0.7071067811865476
_LANE = 128
_MAX_BLOCK_ROWS = 4096


def _round_up(x, m):
    return ((x + m - 1) // m) * m


def _vmem_capacity_bytes():
    """Per-core VMEM capacity, with a conservative (v7x-sized) fallback."""
    try:
        cap = int(pltpu.get_tpu_info().vmem_capacity_bytes)
        if cap > 0:
            return cap
    except Exception:
        pass
    return 64 << 20


def _make_kernel(approximate_gelu):
    def kernel(x_ref, gamma_ref, beta_ref, w_ref, bias_ref, o_ref):
        # x_ref: (br, in_dim) row tile; params arrive pre-cast from the wrapper.
        x = x_ref[...].astype(jnp.float32)

        # --- LayerNorm over last dim (f32 statistics, biased variance) ---
        mu = jnp.mean(x, axis=-1, keepdims=True)
        xc = x - mu
        var = jnp.mean(xc * xc, axis=-1, keepdims=True)
        y = xc * jax.lax.rsqrt(var + LN_EPS) * gamma_ref[...] + beta_ref[...]

        # --- Linear (in_dim -> tn slice of out_pad) on the MXU, f32 accum ---
        z = jnp.dot(y.astype(w_ref.dtype), w_ref[...],
                    preferred_element_type=jnp.float32)
        z = z + bias_ref[...]

        # --- GELU: exact erf (torch.nn.GELU() default); tanh form opt-in ---
        if approximate_gelu:
            g = jax.nn.gelu(z, approximate=True)
        else:
            g = 0.5 * z * (1.0 + jax.lax.erf(z * _INV_SQRT2))

        # Dropout(p=0.0) is identity in the forward pass — nothing to do.
        # TODO(synk): Dropout with p>0 in training mode (PRNG mask) not implemented.
        o_ref[...] = g.astype(o_ref.dtype)

    return kernel


def _plan_tiles(M, in_dim, out_pad, x_itemsize, w_itemsize, sub, block_rows,
                budget):
    """Pick (br, tn) row/out-dim tile sizes from a VMEM byte budget."""
    # Out-dim tile: keep W fully resident unless its double-buffered tile would
    # exceed ~half the budget (important on v7x's 64 MiB VMEM).
    tn = out_pad
    while tn > _LANE and 2 * in_dim * tn * w_itemsize > budget // 2:
        tn = _round_up(max(_LANE, tn // 2), _LANE)

    if block_rows is None:
        # Auto-size rows so the double-buffered x/out tiles plus f32
        # intermediates fill most of what W leaves over.
        w_resident = 2 * in_dim * tn * w_itemsize + 8 * (in_dim + tn)
        per_row = (2 * in_dim * x_itemsize          # double-buffered x tile
                   + 2 * tn * x_itemsize            # double-buffered out tile
                   + 4 * (2 * in_dim + 2 * tn))     # f32 intermediates
        avail = max(budget - w_resident, per_row * sub)
        br = avail // per_row
    else:
        br = int(block_rows)

    br = min(br, _MAX_BLOCK_ROWS, _round_up(M, sub))
    if br >= _LANE:
        br = (br // _LANE) * _LANE        # keep large tiles lane-friendly
    br = max(sub, _round_up(br, sub))

    # Make sure the row axis has >=2 grid steps when M allows so the "parallel"
    # axis can shard across both TensorCores on dual-core chips (v7x).
    if pl.cdiv(M, br) < 2:
        half = _round_up(pl.cdiv(M, 2), sub)
        if sub <= half < M:
            br = half
    return br, tn


@functools.partial(
    jax.jit,
    static_argnames=("block_rows", "approximate_gelu", "matmul_dtype_name"))
def _position_projection_impl(x, gamma, beta, w, bias, *, block_rows,
                              approximate_gelu, matmul_dtype_name):
    B, N, in_dim = x.shape
    out_dim = w.shape[1]
    M = B * N
    matmul_dtype = jnp.dtype(matmul_dtype_name)

    # Parameter prep (no-ops when dtypes already match; tiny vs. x otherwise).
    gamma_f32 = gamma.reshape(1, in_dim).astype(jnp.float32)
    beta_f32 = beta.reshape(1, in_dim).astype(jnp.float32)
    bias_f32 = bias.reshape(1, out_dim).astype(jnp.float32)
    w_c = w.astype(matmul_dtype)

    # Lane-dense output: pad out_dim to a multiple of 128 so output stores are
    # full unmasked vst's; the pad columns are sliced off at the end.
    out_pad = max(_LANE, _round_up(out_dim, _LANE))
    if out_pad != out_dim:
        w_c = jnp.pad(w_c, ((0, 0), (0, out_pad - out_dim)))
        bias_f32 = jnp.pad(bias_f32, ((0, 0), (0, out_pad - out_dim)))

    x2 = x.reshape(M, in_dim)

    # Generation-aware VMEM budget (v5e/v6e ~102 MiB, v7x ~51 MiB).
    vmem_limit = max(32 << 20, min(int(_vmem_capacity_bytes() * 0.8), 112 << 20))
    budget = int(vmem_limit * 0.85)

    sub = 16 if x2.dtype == jnp.bfloat16 else 8
    br, tn = _plan_tiles(M, in_dim, out_pad, x2.dtype.itemsize,
                         w_c.dtype.itemsize, sub, block_rows, budget)
    grid_m = pl.cdiv(M, br)       # partial last row block: OOB reads are
    grid_n = pl.cdiv(out_pad, tn)  # row-local garbage, OOB writes dropped.

    out2 = pl.pallas_call(
        _make_kernel(approximate_gelu),
        out_shape=jax.ShapeDtypeStruct((M, out_pad), x2.dtype),
        grid_spec=pltpu.PrefetchScalarGridSpec(
            num_scalar_prefetch=0,
            grid=(grid_m, grid_n),
            in_specs=[
                pl.BlockSpec((br, in_dim), lambda i, j: (i, 0)),    # x rows
                pl.BlockSpec((1, in_dim), lambda i, j: (0, 0)),     # gamma f32
                pl.BlockSpec((1, in_dim), lambda i, j: (0, 0)),     # beta  f32
                pl.BlockSpec((in_dim, tn), lambda i, j: (0, j)),    # W tile
                pl.BlockSpec((1, tn), lambda i, j: (0, j)),         # bias f32
            ],
            out_specs=pl.BlockSpec((br, tn), lambda i, j: (i, j)),
        ),
        compiler_params=pltpu.CompilerParams(
            dimension_semantics=("parallel", "parallel"),
            vmem_limit_bytes=vmem_limit),
    )(x2, gamma_f32, beta_f32, w_c, bias_f32)

    return out2[:, :out_dim].reshape(B, N, out_dim)


def position_projection(x, gamma, beta, w, bias, *, block_rows=None,
                        matmul_dtype=None, approximate_gelu=False):
    """x: [B, N, in_dim] -> [B, N, out_dim] = GELU(LayerNorm(x) @ W + b).

    block_rows=None auto-sizes the row tile from the VMEM budget.
    matmul_dtype lets f32 inputs opt into bf16 MXU operands (f32 accumulation).
    approximate_gelu=True opts into the tanh GELU (default: exact erf, torch parity).
    """
    if matmul_dtype is None:
        # bf16 inputs ride the native high-throughput MXU path; f32 inputs keep
        # the strict-accuracy f32 matmul (accumulation is f32 either way).
        matmul_dtype = jnp.bfloat16 if x.dtype == jnp.bfloat16 else x.dtype
    return _position_projection_impl(
        x, gamma, beta, w, bias,
        block_rows=block_rows,
        approximate_gelu=bool(approximate_gelu),
        matmul_dtype_name=jnp.dtype(matmul_dtype).name)


def _reference(x, gamma, beta, w, bias):
    xf = x.astype(jnp.float32)
    mu = jnp.mean(xf, axis=-1, keepdims=True)
    var = jnp.mean((xf - mu) ** 2, axis=-1, keepdims=True)
    y = ((xf - mu) * jax.lax.rsqrt(var + LN_EPS) * gamma.astype(jnp.float32)
         + beta.astype(jnp.float32))
    z = y @ w.astype(jnp.float32) + bias.astype(jnp.float32)
    return jax.nn.gelu(z, approximate=False).astype(x.dtype)


if __name__ == "__main__":
    # Small shapes consistent with the module: tokens with a feature dim.
    # N=7 exercises the partial last row block; out_dim=48 exercises the
    # 128-lane output pad + final column slice.
    B, N, in_dim, out_dim = 2, 7, 32, 48

    key = jax.random.PRNGKey(0)
    kx, kw, kb = jax.random.split(key, 3)

    x = jax.random.normal(kx, (B, N, in_dim), dtype=jnp.float32)
    gamma = jnp.ones((in_dim,), dtype=jnp.float32)
    beta = jnp.zeros((in_dim,), dtype=jnp.float32)
    bound = 1.0 / (in_dim ** 0.5)
    w = jax.random.uniform(kw, (in_dim, out_dim), jnp.float32, -bound, bound)
    bias = jax.random.uniform(kb, (out_dim,), jnp.float32, -bound, bound)

    ref = _reference(x, gamma, beta, w, bias)

    # f32 path, auto-sized tiles (splits M=14 into two row tiles -> both the
    # pipelining and the partial-last-block path are exercised).
    out = position_projection(x, gamma, beta, w, bias)
    jax.block_until_ready(out)
    assert out.shape == (B, N, out_dim)
    assert jnp.allclose(out, ref, atol=1e-5, rtol=1e-5), "f32 mismatch vs reference"

    # Explicit small row tile (multi-step grid on the same inputs).
    out_small = position_projection(x, gamma, beta, w, bias, block_rows=8)
    jax.block_until_ready(out_small)
    assert jnp.allclose(out_small, ref, atol=1e-5, rtol=1e-5), "tiled mismatch vs reference"

    # bf16 path: bf16 operands into the MXU, f32 accumulation (looser tolerance).
    xb = x.astype(jnp.bfloat16)
    outb = position_projection(xb, gamma, beta, w.astype(jnp.bfloat16), bias)
    jax.block_until_ready(outb)
    refb = _reference(xb, gamma, beta, w, bias)
    err = jnp.max(jnp.abs(outb.astype(jnp.float32) - refb.astype(jnp.float32)))
    assert float(err) < 3e-2, f"bf16 mismatch vs reference: {float(err)}"

    print("KERNEL_OK")
</pallas_src>

<mosaic_0001>
module attributes {stable_mosaic.version = 11 : i64} {
  func.func @kernel(%arg0: i32, %arg1: i32, %arg2: memref<8x32xf32, #tpu.memory_space<vmem>>, %arg3: memref<1x32xf32, #tpu.memory_space<vmem>>, %arg4: memref<1x32xf32, #tpu.memory_space<vmem>>, %arg5: memref<32x128xf32, #tpu.memory_space<vmem>>, %arg6: memref<1x128xf32, #tpu.memory_space<vmem>>, %arg7: memref<8x128xf32, #tpu.memory_space<vmem>>) attributes {dimension_semantics = [#tpu.dimension_semantics<parallel>, #tpu.dimension_semantics<parallel>], iteration_bounds = array<i64: 2, 1>, scalar_prefetch = 0 : i64, scratch_operands = 0 : i64, tpu.core_type = #tpu.core_type<tc>, window_params = [{transform_indices = @transform_0, window_bounds = array<i64: 8, 32>}, {pipeline_mode = #tpu.pipeline_mode<synchronous>, transform_indices = @transform_1, window_bounds = array<i64: 1, 32>}, {pipeline_mode = #tpu.pipeline_mode<synchronous>, transform_indices = @transform_2, window_bounds = array<i64: 1, 32>}, {transform_indices = @transform_3, window_bounds = array<i64: 32, 128>}, {transform_indices = @transform_4, window_bounds = array<i64: 1, 128>}, {transform_indices = @transform_5, window_bounds = array<i64: 8, 128>}]} {
    %c0 = arith.constant 0 : index
    %c0_0 = arith.constant 0 : index
    %0 = vector.load %arg2[%c0, %c0_0] : memref<8x32xf32, #tpu.memory_space<vmem>>, vector<8x32xf32>
    %cst = arith.constant dense<0.000000e+00> : vector<8xf32>
    %1 = vector.multi_reduction <add>, %0, %cst [1] : vector<8x32xf32> to vector<8xf32>
    %2 = vector.shape_cast %1 : vector<8xf32> to vector<8x1xf32>
    %cst_1 = arith.constant 3.200000e+01 : f32
    %3 = vector.broadcast %cst_1 : f32 to vector<8x1xf32>
    %4 = arith.divf %2, %3 : vector<8x1xf32>
    %5 = vector.broadcast %4 : vector<8x1xf32> to vector<8x32xf32>
    %6 = arith.subf %0, %5 : vector<8x32xf32>
    %7 = arith.mulf %6, %6 : vector<8x32xf32>
    %cst_2 = arith.constant dense<0.000000e+00> : vector<8xf32>
    %8 = vector.multi_reduction <add>, %7, %cst_2 [1] : vector<8x32xf32> to vector<8xf32>
    %9 = vector.shape_cast %8 : vector<8xf32> to vector<8x1xf32>
    %cst_3 = arith.constant 3.200000e+01 : f32
    %10 = vector.broadcast %cst_3 : f32 to vector<8x1xf32>
    %11 = arith.divf %9, %10 : vector<8x1xf32>
    %cst_4 = arith.constant 9.99999974E-6 : f32
    %12 = vector.broadcast %cst_4 : f32 to vector<8x1xf32>
    %13 = arith.addf %11, %12 : vector<8x1xf32>
    %14 = math.rsqrt %13 : vector<8x1xf32>
    %15 = vector.broadcast %14 : vector<8x1xf32> to vector<8x32xf32>
    %16 = arith.mulf %6, %15 : vector<8x32xf32>
    %c0_5 = arith.constant 0 : index
    %c0_6 = arith.constant 0 : index
    %17 = vector.load %arg3[%c0_5, %c0_6] : memref<1x32xf32, #tpu.memory_space<vmem>>, vector<1x32xf32>
    %18 = vector.broadcast %17 : vector<1x32xf32> to vector<8x32xf32>
    %19 = arith.mulf %16, %18 : vector<8x32xf32>
    %c0_7 = arith.constant 0 : index
    %c0_8 = arith.constant 0 : index
    %20 = vector.load %arg4[%c0_7, %c0_8] : memref<1x32xf32, #tpu.memory_space<vmem>>, vector<1x32xf32>
    %21 = vector.broadcast %20 : vector<1x32xf32> to vector<8x32xf32>
    %22 = arith.addf %19, %21 : vector<8x32xf32>
    %c0_9 = arith.constant 0 : index
    %c0_10 = arith.constant 0 : index
    %23 = vector.load %arg5[%c0_9, %c0_10] : memref<32x128xf32, #tpu.memory_space<vmem>>, vector<32x128xf32>
    %cst_11 = arith.constant dense<0.000000e+00> : vector<8x128xf32>
    %24 = tpu.matmul %22, %23, %cst_11 {dimension_numbers = #tpu.dot_dimension_numbers<[1], [0], [0], [1], [0, 0, 1, 1], [], []>} : vector<8x32xf32>, vector<32x128xf32>, vector<8x128xf32> -> vector<8x128xf32>
    %c0_12 = arith.constant 0 : index
    %c0_13 = arith.constant 0 : index
    %25 = vector.load %arg6[%c0_12, %c0_13] : memref<1x128xf32, #tpu.memory_space<vmem>>, vector<1x128xf32>
    %26 = vector.broadcast %25 : vector<1x128xf32> to vector<8x128xf32>
    %27 = arith.addf %24, %26 : vector<8x128xf32>
    %cst_14 = arith.constant 5.000000e-01 : f32
    %28 = vector.broadcast %cst_14 : f32 to vector<8x128xf32>
    %29 = arith.mulf %28, %27 : vector<8x128xf32>
    %cst_15 = arith.constant 0.707106769 : f32
    %30 = vector.broadcast %cst_15 : f32 to vector<8x128xf32>
    %31 = arith.mulf %27, %30 : vector<8x128xf32>
    %32 = math.erf %31 : vector<8x128xf32>
    %cst_16 = arith.constant 1.000000e+00 : f32
    %33 = vector.broadcast %cst_16 : f32 to vector<8x128xf32>
    %34 = arith.addf %33, %32 : vector<8x128xf32>
    %35 = arith.mulf %29, %34 : vector<8x128xf32>
    %c0_17 = arith.constant 0 : index
    %c0_18 = arith.constant 0 : index
    %36 = vector.load %arg7[%c0_17, %c0_18] : memref<8x128xf32, #tpu.memory_space<vmem>>, vector<8x128xf32>
    tpu.vector_store %arg7[%c0_17, %c0_18], %35 {strides = array<i32>} : memref<8x128xf32, #tpu.memory_space<vmem>>, vector<8x128xf32>,
    return
  }
  func.func @transform_0(%arg0: i32, %arg1: i32) -> (i32, i32) {
    %c0_i32 = arith.constant 0 : i32
    %c0_i32_0 = arith.constant 0 : i32
    return %arg0, %c0_i32 : i32, i32
  }
  func.func @transform_1(%arg0: i32, %arg1: i32) -> (i32, i32) {
    %c0_i32 = arith.constant 0 : i32
    %c0_i32_0 = arith.constant 0 : i32
    %c0_i32_1 = arith.constant 0 : i32
    return %c0_i32, %c0_i32_0 : i32, i32
  }
  func.func @transform_2(%arg0: i32, %arg1: i32) -> (i32, i32) {
    %c0_i32 = arith.constant 0 : i32
    %c0_i32_0 = arith.constant 0 : i32
    %c0_i32_1 = arith.constant 0 : i32
    return %c0_i32, %c0_i32_0 : i32, i32
  }
  func.func @transform_3(%arg0: i32, %arg1: i32) -> (i32, i32) {
    %c0_i32 = arith.constant 0 : i32
    %c0_i32_0 = arith.constant 0 : i32
    return %c0_i32, %arg1 : i32, i32
  }
  func.func @transform_4(%arg0: i32, %arg1: i32) -> (i32, i32) {
    %c0_i32 = arith.constant 0 : i32
    %c0_i32_0 = arith.constant 0 : i32
    return %c0_i32, %arg1 : i32, i32
  }
  func.func @transform_5(%arg0: i32, %arg1: i32) -> (i32, i32) {
    %c0_i32 = arith.constant 0 : i32
    return %arg0, %arg1 : i32, i32
  }
}

</mosaic_0001>

<llo_original>
// kernel: _position_projection_impl.1
$region0: #{_position_projection_impl.1}
  #allocation0 [shape = 'u32[]', space=smem, size = 0x4, offset = 0x4, fixed_abs, tag = 'smem constant byte address 0x4 - core index']
  #allocation1 [shape = 'u32[144,128]{1,0:T(1,128)}', space=vmem, size = 0x12000, scoped, tag = 'internal scratch']
  %s0 = inlined_call_operand.vmem [shape: f32[14,32], index: 0, kind: input, shape index: {}]
  %s1 = inlined_call_operand.vmem [shape: f32[1,32], index: 1, kind: input, shape index: {}]
  %s2 = inlined_call_operand.vmem [shape: f32[1,32], index: 2, kind: input, shape index: {}]
  %s3 = inlined_call_operand.vmem [shape: f32[32,128], index: 3, kind: input, shape index: {}]
  %s4 = inlined_call_operand.vmem [shape: f32[1,128], index: 4, kind: input, shape index: {}]
  %s5 = inlined_call_operand.vmem [shape: f32[14,128], index: 5, kind: output, shape index: {}]
  %s6 = sld [smem:[#allocation0]]
  $region53: #{_position_projection_impl.1} parent=0
    _
  %s8 = ssub.s32 1, %s6
  %s9 = scalar_select 0, %s8, %s6
  loop: start=0, step=1, limit=4
  $region2: #{_position_projection_impl.1} parent=0 // loop_pre_header
    _
  $region3: #{_position_projection_impl.1} parent=0 // loop_header
    %s11 = sphi 0, %s15
    %p12 = scmp.ge.s32.totalorder %s11, 4
    %s18 = sphi 0, %s30
    %s19 = sphi 0, %s26
    %s20 = sphi 0, %s18
    %s21 = sphi 0, %s19
    %s22 = sphi 0, %s20
    %s23 = sphi 0, %s21
    %s33 = sphi 0, %s35
    %s36 = sphi 0, %s33
    %s37 = sphi 0, %s36
    %s53 = sphi 0, %s37
    %s57 = sphi 0, %s57
    %s59 = sphi 0, %s57
    %s60 = sphi 0, %s59
    %s74 = sphi 0, %s60
    %s78 = sphi 0, %s78
    %s80 = sphi 0, %s78
    %s81 = sphi 0, %s80
    %s95 = sphi 0, %s81
    %s101 = sphi 0, %s103
    %s104 = sphi 0, %s101
    %s105 = sphi 0, %s104
    %s121 = sphi 0, %s105
    %s127 = sphi 0, %s129
    %s130 = sphi 0, %s127
    %s131 = sphi 0, %s130
    %s147 = sphi 0, %s131
    %s155 = sphi 0, %s157
    %s158 = sphi 0, %s155
    %s159 = sphi 0, %s158
    %s175 = sphi 0, %s159
  $region4: #{_position_projection_impl.1} parent=0 // loop_header_branch
    %14 = sbr.rel (%p12) target = $region8
  $region5: #{_position_projection_impl.1} parent=0 // loop_body
    %s16 = ssub.s32 %s11, 1
    %s17 = ssub.s32 %s11, 2
    %s24 = sadd.s32 1, %s19
    %p25 = scmp.ge.s32.totalorder %s24, 1
    %s26 = scalar_select %p25, 0, %s24
    %s27 = sadd.s32 1, %s18
    %s28 = scalar_select %p25, %s27, %s18
    %p29 = scmp.ge.s32.totalorder %s28, 2
    %s30 = scalar_select %p29, 0, %s28
    %s31 = ssub.s32 %s18, %s30
    %p32 = scmp.eq.s32.totalorder %s31, 0
    %s34 = sadd.s32 %s33, 1
    %s35 = scalar_select %p32, %s33, %s34
    %p38 = pneg %p32
    %p39 = scmp.eq.s32.totalorder %s11, 1
    %p40 = por %p38, %p39
    %p41 = scmp.ne.s32.totalorder %s33, %s36
    %p42 = scmp.eq.s32.totalorder %s11, 0
    %p43 = por %p41, %p42
    %p44 = scmp.ne.s32.totalorder %s33, %s36
    %p45 = scmp.eq.s32.totalorder %s16, 1
    %p46 = por %p44, %p45
    %p47 = scmp.ne.s32.totalorder %s36, %s37
    %p48 = scmp.eq.s32.totalorder %s16, 0
    %p49 = por %p47, %p48
    %p50 = scmp.ne.s32.totalorder %s36, %s37
    %p51 = scmp.eq.s32.totalorder %s17, 1
    %p52 = por %p50, %p51
    %p54 = scmp.ne.s32.totalorder %s37, %s53
    %p55 = scmp.eq.s32.totalorder %s17, 0
    %p56 = por %p54, %p55
    %s58 = sadd.s32 %s57, 1
    %p61 = scmp.eq.s32.totalorder %s11, 1
    %p62 = scmp.ne.s32.totalorder %s57, %s59
    %p63 = scmp.eq.s32.totalorder %s11, 0
    %p64 = por %p62, %p63
    %p65 = scmp.ne.s32.totalorder %s57, %s59
    %p66 = scmp.eq.s32.totalorder %s16, 1
    %p67 = por %p65, %p66
    %p68 = scmp.ne.s32.totalorder %s59, %s60
    %p69 = scmp.eq.s32.totalorder %s16, 0
    %p70 = por %p68, %p69
    %p71 = scmp.ne.s32.totalorder %s59, %s60
    %p72 = scmp.eq.s32.totalorder %s17, 1
    %p73 = por %p71, %p72
    %p75 = scmp.ne.s32.totalorder %s60, %s74
    %p76 = scmp.eq.s32.totalorder %s17, 0
    %p77 = por %p75, %p76
    %s79 = sadd.s32 %s78, 1
    %p82 = scmp.eq.s32.totalorder %s11, 1
    %p83 = scmp.ne.s32.totalorder %s78, %s80
    %p84 = scmp.eq.s32.totalorder %s11, 0
    %p85 = por %p83, %p84
    %p86 = scmp.ne.s32.totalorder %s78, %s80
    %p87 = scmp.eq.s32.totalorder %s16, 1
    %p88 = por %p86, %p87
    %p89 = scmp.ne.s32.totalorder %s80, %s81
    %p90 = scmp.eq.s32.totalorder %s16, 0
    %p91 = por %p89, %p90
    %p92 = scmp.ne.s32.totalorder %s80, %s81
    %p93 = scmp.eq.s32.totalorder %s17, 1
    %p94 = por %p92, %p93
    %p96 = scmp.ne.s32.totalorder %s81, %s95
    %p97 = scmp.eq.s32.totalorder %s17, 0
    %p98 = por %p96, %p97
    %s99 = ssub.s32 %s19, %s26
    %p100 = scmp.eq.s32.totalorder %s99, 0
    %s102 = sadd.s32 %s101, 1
    %s103 = scalar_select %p100, %s101, %s102
    %p106 = pneg %p100
    %p107 = scmp.eq.s32.totalorder %s11, 1
    %p108 = por %p106, %p107
    %p109 = scmp.ne.s32.totalorder %s101, %s104
    %p110 = scmp.eq.s32.totalorder %s11, 0
    %p111 = por %p109, %p110
    %p112 = scmp.ne.s32.totalorder %s101, %s104
    %p113 = scmp.eq.s32.totalorder %s16, 1
    %p114 = por %p112, %p113
    %p115 = scmp.ne.s32.totalorder %s104, %s105
    %p116 = scmp.eq.s32.totalorder %s16, 0
    %p117 = por %p115, %p116
    %p118 = scmp.ne.s32.totalorder %s104, %s105
    %p119 = scmp.eq.s32.totalorder %s17, 1
    %p120 = por %p118, %p119
    %p122 = scmp.ne.s32.totalorder %s105, %s121
    %p123 = scmp.eq.s32.totalorder %s17, 0
    %p124 = por %p122, %p123
    %s125 = ssub.s32 %s19, %s26
    %p126 = scmp.eq.s32.totalorder %s125, 0
    %s128 = sadd.s32 %s127, 1
    %s129 = scalar_select %p126, %s127, %s128
    %p132 = pneg %p126
    %p133 = scmp.eq.s32.totalorder %s11, 1
    %p134 = por %p132, %p133
    %p135 = scmp.ne.s32.totalorder %s127, %s130
    %p136 = scmp.eq.s32.totalorder %s11, 0
    %p137 = por %p135, %p136
    %p138 = scmp.ne.s32.totalorder %s127, %s130
    %p139 = scmp.eq.s32.totalorder %s16, 1
    %p140 = por %p138, %p139
    %p141 = scmp.ne.s32.totalorder %s130, %s131
    %p142 = scmp.eq.s32.totalorder %s16, 0
    %p143 = por %p141, %p142
    %p144 = scmp.ne.s32.totalorder %s130, %s131
    %p145 = scmp.eq.s32.totalorder %s17, 1
    %p146 = por %p144, %p145
    %p148 = scmp.ne.s32.totalorder %s131, %s147
    %p149 = scmp.eq.s32.totalorder %s17, 0
    %p150 = por %p148, %p149
    %s151 = ssub.s32 %s18, %s30
    %s152 = ssub.s32 %s19, %s26
    %s153 = sor.u32 %s151, %s152
    %p154 = scmp.eq.s32.totalorder %s153, 0
    %s156 = sadd.s32 %s155, 1
    %s157 = scalar_select %p154, %s155, %s156
    %p160 = pneg %p154
    %p161 = scmp.eq.s32.totalorder %s11, 1
    %p162 = por %p160, %p161
    %p163 = scmp.ne.s32.totalorder %s155, %s158
    %p164 = scmp.eq.s32.totalorder %s11, 0
    %p165 = por %p163, %p164
    %p166 = scmp.ne.s32.totalorder %s155, %s158
    %p167 = scmp.eq.s32.totalorder %s16, 1
    %p168 = por %p166, %p167
    %p169 = scmp.ne.s32.totalorder %s158, %s159
    %p170 = scmp.eq.s32.totalorder %s16, 0
    %p171 = por %p169, %p170
    %p172 = scmp.ne.s32.totalorder %s158, %s159
    %p173 = scmp.eq.s32.totalorder %s17, 1
    %p174 = por %p172, %p173
    %p176 = scmp.ne.s32.totalorder %s159, %s175
    %p177 = scmp.eq.s32.totalorder %s17, 0
    %p178 = por %p176, %p177
    %p179 = scmp.le.s32.totalorder 1, %s11
    %p180 = scmp.lt.s32.totalorder %s11, 3
    %p181 = pnand %p179, %p180
    %p182 = pneg %p181
    // Predicated region
    $region9: #{_position_projection_impl.1} parent=5 // pred_check
      _
    $region10: #{_position_projection_impl.1} parent=5 // pred_check_branch
      %184 = sbr.rel (%p181) target = $region12
    $region11: #{_position_projection_impl.1} parent=5 // pred_region
      %s185 = ssub.s32 %s11, 1
      // Predicated region
      $region13: #{_position_projection_impl.1} parent=11 // pred_check
        %p186 = pneg %p70
      $region14: #{_position_projection_impl.1} parent=11 // pred_check_branch
        %188 = sbr.rel (%p186) target = $region16
      $region15: #{_position_projection_impl.1} parent=11 // pred_region
        _
      $region16: #{_position_projection_impl.1} parent=11 // pred_fallthru
        _
      // Predicated region
      $region17: #{_position_projection_impl.1} parent=11 // pred_check
        %p189 = pneg %p91
      $region18: #{_position_projection_impl.1} parent=11 // pred_check_branch
        %191 = sbr.rel (%p189) target = $region20
      $region19: #{_position_projection_impl.1} parent=11 // pred_region
        _
      $region20: #{_position_projection_impl.1} parent=11 // pred_fallthru
        _
      // Predicated region
      $region21: #{_position_projection_impl.1} parent=11 // pred_check
        %p192 = pneg %p117
      $region22: #{_position_projection_impl.1} parent=11 // pred_check_branch
        %194 = sbr.rel (%p192) target = $region24
      $region23: #{_position_projection_impl.1} parent=11 // pred_region
        %p195 = scmp.lt.s32.totalorder %s21, 0
        %s196 = scalar_select %p195, %s21, 0
        %s197 = smul.addr %s196, 8
        %s198 = scalar_lea.vmem %s3, %s197
      $region24: #{_position_projection_impl.1} parent=11 // pred_fallthru
        _
      // Predicated region
      $region25: #{_position_projection_impl.1} parent=11 // pred_check
        %p199 = pneg %p143
      $region26: #{_position_projection_impl.1} parent=11 // pred_check_branch
        %201 = sbr.rel (%p199) target = $region28
      $region27: #{_position_projection_impl.1} parent=11 // pred_region
        %p202 = scmp.lt.s32.totalorder %s21, 0
        %s203 = scalar_select %p202, %s21, 0
        %s204 = scalar_lea.vmem %s4, %s203
      $region28: #{_position_projection_impl.1} parent=11 // pred_fallthru
        _
    $region12: #{_position_projection_impl.1} parent=5 // pred_fallthru
      _
    %p205 = scmp.lt.s32.totalorder %s11, 2
    // Predicated region
    $region29: #{_position_projection_impl.1} parent=5 // pred_check
      %p206 = pneg %p205
    $region30: #{_position_projection_impl.1} parent=5 // pred_check_branch
      %208 = sbr.rel (%p206) target = $region32
    $region31: #{_position_projection_impl.1} parent=5 // pred_region
      // Predicated region
      $region33: #{_position_projection_impl.1} parent=31 // pred_check
        %p209 = pneg %p43
      $region34: #{_position_projection_impl.1} parent=31 // pred_check_branch
        %211 = sbr.rel (%p209) target = $region36
      $region35: #{_position_projection_impl.1} parent=31 // pred_region
        %p212 = scmp.lt.s32.totalorder %s18, 1
        %s213 = scalar_select %p212, %s18, 1
        %s214 = smul.addr %s213, 8
        %s215 = scalar_lea.vmem %s0, %s214
      $region36: #{_position_projection_impl.1} parent=31 // pred_fallthru
        _
    $region32: #{_position_projection_impl.1} parent=5 // pred_fallthru
      _
    %p216 = scmp.le.s32.totalorder 1, %s11
    %p217 = scmp.lt.s32.totalorder %s11, 3
    %p218 = pnand %p216, %p217
    %p219 = pneg %p218
    // Predicated region
    $region37: #{_position_projection_impl.1} parent=5 // pred_check
      _
    $region38: #{_position_projection_impl.1} parent=5 // pred_check_branch
      %221 = sbr.rel (%p218) target = $region40
    $region39: #{_position_projection_impl.1} parent=5 // pred_region
      %s222 = ssub.s32 %s11, 1
      %p223 = scmp.lt.s32.totalorder %s20, 1
      %s224 = scalar_select %p223, %s20, 1
      %s225 = smul.addr %s224, 8
      %s226 = scalar_lea.vmem %s0, %s225
      %p227 = pneg %p49
      %p228 = pneg %p46
      %p229 = pneg %p70
      %p230 = pneg %p67
      %p231 = pneg %p91
      %p232 = pneg %p88
      %p233 = scmp.lt.s32.totalorder %s21, 0
      %s234 = scalar_select %p233, %s21, 0
      %s235 = smul.addr %s234, 8
      %s236 = scalar_lea.vmem %s3, %s235
      %p237 = pneg %p117
      %p238 = pneg %p114
      %p239 = scmp.lt.s32.totalorder %s21, 0
      %s240 = scalar_select %p239, %s21, 0
      %s241 = scalar_lea.vmem %s4, %s240
      %p242 = pneg %p143
      %p243 = pneg %p140
      %p244 = pneg %p171
      %p245 = pneg %p168
      %p246 = scmp.lt.s32.totalorder %s20, 1
      %s247 = scalar_select %p246, %s20, 1
      %p248 = scmp.lt.s32.totalorder %s21, 0
      %s249 = scalar_select %p248, %s21, 0
      %s250 = sadd.s32 %s249, %s247
      %s251 = smul.addr %s250, 8
      %s252 = scalar_lea.vmem %s5, %s251
      %p253 = scmp.lt.s32.totalorder %s20, 1
      %s254 = scalar_select %p253, %s20, 1
      %s255 = smul.addr %s254, 8
      %s256 = scalar_lea.vmem %s0, %s255
      %p257 = scmp.lt.s32.totalorder %s21, 0
      %s258 = scalar_select %p257, %s21, 0
      %s259 = smul.addr %s258, 8
      %s260 = scalar_lea.vmem %s3, %s259
      %p261 = scmp.lt.s32.totalorder %s21, 0
      %s262 = scalar_select %p261, %s21, 0
      %s263 = scalar_lea.vmem %s4, %s262
      %p264 = scmp.lt.s32.totalorder %s20, 1
      %s265 = scalar_select %p264, %s20, 1
      %p266 = scmp.lt.s32.totalorder %s21, 0
      %s267 = scalar_select %p266, %s21, 0
      %s268 = sadd.s32 %s267, %s265
      %s269 = smul.addr %s268, 8
      %s270 = scalar_lea.vmem %s5, %s269
      %v271 = vld [vmem:[%s256] sm:$0xff]
      %vm272 = vcmask 261120
      %v273 = vsel %vm272, %v271, 0.0
      %274 = vadd.xlane.f32.xlu0 %v273
      %v275 = vpop.xlane.xlu0 %274
      %v276 = vrcp.pop 32.0
      %v277 = vmul.f32 %v275, %v276
      %v278 = vsub.f32 %v271, %v277
      %v279 = vmul.f32 %v278, %v278
      %v280 = vsel %vm272, %v279, 0.0
      %281 = vadd.xlane.f32.xlu0 %v280
      %v282 = vpop.xlane.xlu0 %281
      %v283 = vmul.f32 %v282, %v276
      %v284 = vadd.f32 %v283, 1e-05
      %v285 = vrsqrt.pop %v284
      %v286 = vmul.f32 %v278, %v285
      %v287 = vld [vmem:[%s1] sm:$0x1]
      %v289 = vlaneseq
      %v290 = vshrl.u32 %v289, 7
      %v291 = vsub.s32 0, %v290
      %v292 = vrot.slane %v287, %v291
      %v294 = vmul.f32 %v286, %v292
      %v295 = vld [vmem:[%s2] sm:$0x1]
      %v297 = vlaneseq
      %v298 = vshrl.u32 %v297, 7
      %v299 = vsub.s32 0, %v298
      %v300 = vrot.slane %v295, %v299
      %v302 = vadd.f32 %v294, %v300
      %v303 = vld [vmem:[%s260] sm:$0xff]
      %v304 = vld [vmem:[%s260 + $0x8] sm:$0xff]
      %v305 = vld [vmem:[%s260 + $0x10] sm:$0xff]
      %v306 = vld [vmem:[%s260 + $0x18] sm:$0xff]
      %v307 = vld [vmem:[%s263] sm:$0x1]
      %v309 = vlaneseq
      %v310 = vshrl.u32 %v309, 7
      %v311 = vsub.s32 0, %v310
      %v312 = vrot.slane %v307, %v311
      %v315 = vsel %vm272, %v302, 0
      %317 = vmatprep.subr.mxu0 0.0
      %318 = vmatpush1.msra.mxu0 %v303
      %319 = vmatprep.subr.mxu0 0.0
      %320 = vmatpush1.msra.mxu0 %v304
      %321 = vmatprep.subr.mxu0 0.0
      %322 = vmatpush1.msra.mxu0 %v305
      %323 = vmatprep.subr.mxu0 0.0
      %324 = vmatpush1.msra.mxu0 %v306
      %325 = vmatprep.subr.mxu0 0.0
      %326 = vmatpush1.msra.mxu0 0.0
      %327 = vmatprep.subr.mxu0 0.0
      %328 = vmatpush1.msra.mxu0 0.0
      %329 = vmatprep.subr.mxu0 0.0
      %330 = vmatpush1.msra.mxu0 0.0
      %331 = vmatprep.subr.mxu0 0.0
      %332 = vmatpush1.msra.mxu0 0.0
      %333 = vmatprep.subr.mxu0 0.0
      %334 = vmatpush1.msra.mxu0 0.0
      %335 = vmatprep.subr.mxu0 0.0
      %336 = vmatpush1.msra.mxu0 0.0
      %337 = vmatprep.subr.mxu0 0.0
      %338 = vmatpush1.msra.mxu0 0.0
      %339 = vmatprep.subr.mxu0 0.0
      %340 = vmatpush1.msra.mxu0 0.0
      %341 = vmatprep.subr.mxu0 0.0
      %342 = vmatpush1.msra.mxu0 0.0
      %343 = vmatprep.subr.mxu0 0.0
      %344 = vmatpush1.msra.mxu0 0.0
      %345 = vmatprep.subr.mxu0 0.0
      %346 = vmatpush1.msra.mxu0 0.0
      %347 = vmatprep.subr.mxu0 0.0
      %348 = vmatpush1.msra.mxu0 0.0
      %349 = vmatprep.subr.mxu0 0.0
      %350 = vmatpush1.msra.mxu0 0.0
      %351 = vmatprep.subr.mxu0 0.0
      %352 = vmatpush1.msra.mxu0 0.0
      %353 = vmatprep.subr.mxu0 0.0
      %354 = vmatpush1.msra.mxu0 0.0
      %355 = vmatprep.subr.mxu0 0.0
      %356 = vmatpush1.msra.mxu0 0.0
      %357 = vmatprep.subr.mxu0 0.0
      %358 = vmatpush1.msra.mxu0 0.0
      %359 = vmatprep.subr.mxu0 0.0
      %360 = vmatpush1.msra.mxu0 0.0
      %361 = vmatprep.subr.mxu0 0.0
      %362 = vmatpush1.msra.mxu0 0.0
      %363 = vmatprep.subr.mxu0 0.0
      %364 = vmatpush1.msra.mxu0 0.0
      %365 = vmatprep.subr.mxu0 0.0
      %366 = vmatpush1.msra.mxu0 0.0
      %367 = vmatprep.subr.mxu0 0.0
      %368 = vmatpush1.msra.mxu0 0.0
      %369 = vmatprep.subr.mxu0 0.0
      %370 = vmatpush1.msra.mxu0 0.0
      %371 = vmatprep.subr.mxu0 0.0
      %372 = vmatpush1.msra.mxu0 0.0
      %373 = vmatprep.subr.mxu0 0.0
      %374 = vmatpush1.msra.mxu0 0.0
      %375 = vmatprep.subr.mxu0 0.0
      %376 = vmatpush1.msra.mxu0 0.0
      %377 = vmatprep.subr.mxu0 0.0
      %378 = vmatpush1.msra.mxu0 0.0
      %379 = vmatprep.subr.mxu0 0.0
      %380 = vmatpush1.msra.mxu0 0.0
      %381 = vmatprep.mubr.f32.mxu0 0.0
      %382 = vmatmul.mubr.f32.gmra.mrb[0].mxu0 %v315
      %v383 = vpop.f32.mrb[0].mxu0
      %v384 = vadd.f32 %v312, %v383
      %v385 = vpop.f32.mrb[0].mxu0
      %386 = vdwg.mxu0
      %v387 = vmul.f32 %v384, 0.5
      %v388 = vmul.f32 %v384, 0.70710677
      %v389 = verf.f32.pop %v388
      %v390 = vadd.f32 %v389, 1.0
      %v391 = vmul.f32 %v387, %v390
      %392 = vst [vmem:[%s270] sm:$0xff] %v391
      %p393 = scmp.lt.s32.totalorder %s20, 1
      %s394 = scalar_select %p393, %s20, 1
      %p395 = scmp.lt.s32.totalorder %s21, 0
      %s396 = scalar_select %p395, %s21, 0
      %s397 = sadd.s32 %s396, %s394
      %s398 = smul.addr %s397, 8
      %s399 = scalar_lea.vmem %s5, %s398
      // Predicated region
      $region41: #{_position_projection_impl.1} parent=39 // pred_check
        %p400 = pneg %p168
      $region42: #{_position_projection_impl.1} parent=39 // pred_check_branch
        %402 = sbr.rel (%p400) target = $region44
      $region43: #{_position_projection_impl.1} parent=39 // pred_region
        _
      $region44: #{_position_projection_impl.1} parent=39 // pred_fallthru
        _
    $region40: #{_position_projection_impl.1} parent=5 // pred_fallthru
      _
    %p403 = scmp.le.s32.totalorder 2, %s11
    // Predicated region
    $region45: #{_position_projection_impl.1} parent=5 // pred_check
      %p404 = pneg %p403
    $region46: #{_position_projection_impl.1} parent=5 // pred_check_branch
      %406 = sbr.rel (%p404) target = $region48
    $region47: #{_position_projection_impl.1} parent=5 // pred_region
      %s407 = ssub.s32 %s11, 2
      // Predicated region
      $region49: #{_position_projection_impl.1} parent=47 // pred_check
        %p408 = pneg %p174
      $region50: #{_position_projection_impl.1} parent=47 // pred_check_branch
        %410 = sbr.rel (%p408) target = $region52
      $region51: #{_position_projection_impl.1} parent=47 // pred_region
        %p411 = scmp.lt.s32.totalorder %s22, 1
        %s412 = scalar_select %p411, %s22, 1
        %p413 = scmp.lt.s32.totalorder %s23, 0
        %s414 = scalar_select %p413, %s23, 0
        %s415 = sadd.s32 %s414, %s412
        %s416 = smul.addr %s415, 8
        %s417 = scalar_lea.vmem %s5, %s416
      $region52: #{_position_projection_impl.1} parent=47 // pred_fallthru
        _
    $region48: #{_position_projection_impl.1} parent=5 // pred_fallthru
      _
  $region6: #{_position_projection_impl.1} parent=0 // loop_footer
    %s15 = sadd.s32 1, %s11
  $region7: #{_position_projection_impl.1} parent=0 // loop_footer_branch
    %10 = sbr.rel target = $region3
  $region8: #{_position_projection_impl.1} parent=0 // loop_exit
    _

</llo_original>
